<compile_context>
chip_gen: v7x
topology: tpu7x:2x2x1
jax: 0.10.0
libtpu: 0.0.40
codegen_flags: <defaults>
</compile_context>

<pallas_src>
import functools

import jax
import jax.numpy as jnp
import numpy as np
from jax.experimental import pallas as pl
from jax.experimental.pallas import tpu as pltpu

EPS = 1e-5


def _res_block_kernel(x_ref, w1_ref, w2_ref, shift_ref, mask_ref, out_ref, *,
                      width):
    # x_ref    : (B, C, HW)  f32   NCHW-flat input block (B images)
    # w1_ref   : (C, 9C)     bf16  conv1 im2col weight, BN1 scale folded in
    # w2_ref   : (C, 9C)     bf16  conv2 im2col weight, BN2 scale folded in
    # shift_ref: (2, C, 1)   f32   per-channel shifts (conv bias + BN folded)
    # mask_ref : (9, HW)     f32   {0,1} per-tap validity masks (SAME padding)
    # out_ref  : (B, C, HW)  f32   NCHW-flat output block
    B, C, HW = x_ref.shape
    W = width
    P = W + 1                                   # max |flat tap offset|

    w1 = w1_ref[...]                            # (C, 9C) bf16
    w2 = w2_ref[...]                            # (C, 9C) bf16
    sh1 = shift_ref[0]                          # (C, 1)  f32
    sh2 = shift_ref[1]                          # (C, 1)  f32
    masks = mask_ref[...]                       # (9, HW) f32
    zpad = jnp.zeros((C, P), jnp.float32)       # lane padding for shifted taps

    def im2col(src):
        # src: (C, HW) f32 -> (9C, HW) bf16 patch matrix (register resident).
        # Row k*C + ci holds tap (dy, dx) = (k // 3, k % 3) of channel ci:
        # a lane-shifted copy of the flattened image (piece[m] = src[m + s]),
        # zeroed where the tap falls outside the image (the mask implements
        # SAME padding and kills the row-wraparound pickup).
        padded = jnp.concatenate([zpad, src, zpad], axis=1)   # (C, HW + 2P)
        rows = []
        for dy in range(3):
            for dx in range(3):
                k = dy * 3 + dx
                s = (dy - 1) * W + (dx - 1)                   # flat tap offset
                piece = padded[:, P + s:P + s + HW]           # (C, HW)
                if k != 4:                                    # centre tap: all valid
                    piece = piece * masks[k:k + 1, :]
                rows.append(piece)
        return jnp.concatenate(rows, axis=0).astype(jnp.bfloat16)

    for b in range(B):                                        # static, B is small
        x_img = x_ref[b]                                      # (C, HW) f32

        # ---- conv1 (+ folded bias/BN1) + ReLU : one bf16 MXU matmul ----
        mid = jnp.dot(w1, im2col(x_img), preferred_element_type=jnp.float32)
        mid = jnp.maximum(mid + sh1, 0.0)                     # f32 VPU epilogue

        # ---- conv2 (+ folded bias/BN2) + residual (f32) + ReLU ----
        y = jnp.dot(w2, im2col(mid), preferred_element_type=jnp.float32)
        y = jnp.maximum(y + sh2 + x_img, 0.0)

        out_ref[b] = y                                        # lane-dense store


def _make_tap_masks(H, W):
    """(9, H*W) {0,1} masks: mask[k, m] = 1 iff tap k of output pixel m is
    inside the image (SAME padding with a 3x3 kernel)."""
    idx = np.arange(H * W)
    h, w = idx // W, idx % W
    m = np.zeros((9, H * W), np.float32)
    for dy in range(3):
        for dx in range(3):
            k = dy * 3 + dx
            valid = ((h + dy - 1 >= 0) & (h + dy - 1 < H) &
                     (w + dx - 1 >= 0) & (w + dx - 1 < W))
            m[k] = valid.astype(np.float32)
    return jnp.asarray(m)


def _pick_block_batch(N, C, HW, budget_bytes=8 << 20):
    """Largest divisor of N that (a) keeps >= 2 grid steps so both v7x
    TensorCores get work under dimension_semantics=('parallel',) and
    (b) keeps the double-buffered f32 activation blocks tiny vs VMEM
    (64 MiB on v7x, 128 MiB on v5e/v6e)."""
    best = 1
    for b in range(1, N + 1):
        if N % b != 0:
            continue
        if N >= 2 and N // b < 2:
            continue
        if 4 * b * C * HW * 4 > budget_bytes:   # in+out blocks, 2 buffers each
            continue
        best = b
    return best


def basic_res_block(x_nchw, params):
    """x_nchw: (N, C, H, W) float32 (PyTorch convention). Returns same shape."""
    w1_f, w2_f, shifts = params
    N, C, H, W = x_nchw.shape
    HW = H * W

    # Native NCHW: flattening the spatial dims is layout-free (no transpose /
    # pad pre-pass materialized in HBM before the kernel).
    x_flat = x_nchw.reshape(N, C, HW).astype(jnp.float32)
    masks = _make_tap_masks(H, W)                                # (9, HW)

    B = _pick_block_batch(N, C, HW)
    grid = (N // B,)

    flops = 4 * 9 * C * C * N * HW                               # two 3x3 convs
    bytes_accessed = int((x_flat.size + N * C * HW) * 4 +
                         (w1_f.size + w2_f.size) * 2 +
                         shifts.size * 4 + masks.size * 4)

    kernel = functools.partial(_res_block_kernel, width=W)

    out_flat = pl.pallas_call(
        kernel,
        out_shape=jax.ShapeDtypeStruct((N, C, HW), jnp.float32),
        grid_spec=pltpu.PrefetchScalarGridSpec(
            num_scalar_prefetch=0,
            grid=grid,                                   # B images per step
            in_specs=[
                pl.BlockSpec((B, C, HW), lambda n: (n, 0, 0)),
                pl.BlockSpec((C, 9 * C), lambda n: (0, 0)),
                pl.BlockSpec((C, 9 * C), lambda n: (0, 0)),
                pl.BlockSpec((2, C, 1), lambda n: (0, 0, 0)),
                pl.BlockSpec((9, HW), lambda n: (0, 0)),
            ],
            out_specs=pl.BlockSpec((B, C, HW), lambda n: (n, 0, 0)),
        ),
        compiler_params=pltpu.CompilerParams(
            dimension_semantics=("parallel",),           # megacore on v7x
            vmem_limit_bytes=32 * 1024 * 1024,           # safe on v5e..v7x (64 MiB phys on v7x)
        ),
        cost_estimate=pl.CostEstimate(
            flops=flops, transcendentals=0, bytes_accessed=bytes_accessed),
    )(x_flat, w1_f, w2_f, shifts, masks)

    # Kernel output is already NCHW-flat; reshape is free.
    return out_flat.reshape(N, C, H, W)


# ---------------- deterministic parameter construction ----------------

def make_raw_params(key, C):
    ks = jax.random.split(key, 12)
    bound = 1.0 / np.sqrt(C * 9)

    def conv(kw, kb):
        w = jax.random.uniform(kw, (C, C, 3, 3), jnp.float32, -bound, bound)  # OIHW
        b = jax.random.uniform(kb, (C,), jnp.float32, -bound, bound)
        return w, b

    def bn(kg, kb, km, kv):
        gamma = 1.0 + 0.1 * jax.random.normal(kg, (C,), jnp.float32)
        beta = 0.1 * jax.random.normal(kb, (C,), jnp.float32)
        mean = 0.1 * jax.random.normal(km, (C,), jnp.float32)
        var = 1.0 + 0.1 * jnp.abs(jax.random.normal(kv, (C,), jnp.float32))
        return gamma, beta, mean, var

    w1, b1 = conv(ks[0], ks[1])
    g1, be1, m1, v1 = bn(ks[2], ks[3], ks[4], ks[5])
    w2, b2 = conv(ks[6], ks[7])
    g2, be2, m2, v2 = bn(ks[8], ks[9], ks[10], ks[11])
    return (w1, b1, g1, be1, m1, v1, w2, b2, g2, be2, m2, v2)


def fold_params(raw, C):
    """Fold conv bias + eval-mode BN into channel-major im2col weights and
    per-channel shifts. Weights are cast to bf16 (MXU operand dtype, f32
    accumulation in the kernel); shifts stay f32."""
    w1, b1, g1, be1, m1, v1, w2, b2, g2, be2, m2, v2 = raw

    def fold(w_pt, b, gamma, beta, mean, var):
        s = gamma / jnp.sqrt(var + EPS)
        # OIHW -> (co, dy, dx, ci) -> (C, 9C); column index = (dy*3+dx)*C + ci
        w_k = jnp.transpose(w_pt, (0, 2, 3, 1)).reshape(C, 9 * C)
        w_scaled = (w_k * s[:, None]).astype(jnp.bfloat16)   # fold BN scale
        shift = ((b - mean) * s + beta).reshape(C, 1)        # fold bias + BN shift
        return w_scaled, shift

    w1_f, sh1 = fold(w1, b1, g1, be1, m1, v1)
    w2_f, sh2 = fold(w2, b2, g2, be2, m2, v2)
    shifts = jnp.stack([sh1, sh2]).astype(jnp.float32)       # (2, C, 1)
    return (w1_f, w2_f, shifts)


# ---------------- pure-JAX reference (for correctness check) ----------------

def reference(x_nchw, raw):
    w1, b1, g1, be1, m1, v1, w2, b2, g2, be2, m2, v2 = raw
    x = jnp.transpose(x_nchw, (0, 2, 3, 1))

    def conv(y, w_pt, b):
        w = jnp.transpose(w_pt, (2, 3, 1, 0))  # HWIO
        out = jax.lax.conv_general_dilated(
            y, w, (1, 1), 'SAME', dimension_numbers=('NHWC', 'HWIO', 'NHWC'))
        return out + b

    def bn(y, g, be, m, v):
        return (y - m) / jnp.sqrt(v + EPS) * g + be

    mid = jax.nn.relu(bn(conv(x, w1, b1), g1, be1, m1, v1))
    out = bn(conv(mid, w2, b2), g2, be2, m2, v2)
    out = jax.nn.relu(x + out)
    return jnp.transpose(out, (0, 3, 1, 2))


if __name__ == "__main__":
    N, C, H, W = 2, 4, 16, 16
    key = jax.random.PRNGKey(0)
    kx, kp = jax.random.split(key)

    x = jax.random.normal(kx, (N, C, H, W), jnp.float32)
    raw = make_raw_params(kp, C)
    params = fold_params(raw, C)

    out = jax.block_until_ready(basic_res_block(x, params))
    ref = jax.block_until_ready(reference(x, raw))

    assert out.shape == (N, C, H, W)
    # bf16 MXU operands with f32 accumulation -> looser tolerance than pure f32.
    np.testing.assert_allclose(np.asarray(out), np.asarray(ref),
                               rtol=3e-2, atol=3e-2)
    print("KERNEL_OK")
</pallas_src>

<mosaic_0001>
module attributes {stable_mosaic.version = 11 : i64} {
  func.func @_res_block_kernel(%arg0: i32, %arg1: memref<1x4x256xf32, #tpu.memory_space<vmem>>, %arg2: memref<4x36xbf16, #tpu.memory_space<vmem>>, %arg3: memref<4x36xbf16, #tpu.memory_space<vmem>>, %arg4: memref<2x4x1xf32, #tpu.memory_space<vmem>>, %arg5: memref<9x256xf32, #tpu.memory_space<vmem>>, %arg6: memref<1x4x256xf32, #tpu.memory_space<vmem>>) attributes {dimension_semantics = [#tpu.dimension_semantics<parallel>], iteration_bounds = array<i64: 2>, scalar_prefetch = 0 : i64, scratch_operands = 0 : i64, tpu.core_type = #tpu.core_type<tc>, window_params = [{transform_indices = @transform_0, window_bounds = array<i64: 1, 4, 256>}, {pipeline_mode = #tpu.pipeline_mode<synchronous>, transform_indices = @transform_1, window_bounds = array<i64: 4, 36>}, {pipeline_mode = #tpu.pipeline_mode<synchronous>, transform_indices = @transform_2, window_bounds = array<i64: 4, 36>}, {pipeline_mode = #tpu.pipeline_mode<synchronous>, transform_indices = @transform_3, window_bounds = array<i64: 2, 4, 1>}, {pipeline_mode = #tpu.pipeline_mode<synchronous>, transform_indices = @transform_4, window_bounds = array<i64: 9, 256>}, {transform_indices = @transform_5, window_bounds = array<i64: 1, 4, 256>}]} {
    %c0 = arith.constant 0 : index
    %c0_0 = arith.constant 0 : index
    %0 = vector.load %arg2[%c0, %c0_0] : memref<4x36xbf16, #tpu.memory_space<vmem>>, vector<4x36xbf16>
    %c0_1 = arith.constant 0 : index
    %c0_2 = arith.constant 0 : index
    %1 = vector.load %arg3[%c0_1, %c0_2] : memref<4x36xbf16, #tpu.memory_space<vmem>>, vector<4x36xbf16>
    %c0_3 = arith.constant 0 : index
    %c0_4 = arith.constant 0 : index
    %c0_5 = arith.constant 0 : index
    %2 = vector.load %arg4[%c0_3, %c0_4, %c0_5] : memref<2x4x1xf32, #tpu.memory_space<vmem>>, vector<1x4x1xf32>
    %3 = vector.shape_cast %2 : vector<1x4x1xf32> to vector<4x1xf32>
    %c1 = arith.constant 1 : index
    %c0_6 = arith.constant 0 : index
    %c0_7 = arith.constant 0 : index
    %4 = vector.load %arg4[%c1, %c0_6, %c0_7] : memref<2x4x1xf32, #tpu.memory_space<vmem>>, vector<1x4x1xf32>
    %5 = vector.shape_cast %4 : vector<1x4x1xf32> to vector<4x1xf32>
    %c0_8 = arith.constant 0 : index
    %c0_9 = arith.constant 0 : index
    %6 = vector.load %arg5[%c0_8, %c0_9] : memref<9x256xf32, #tpu.memory_space<vmem>>, vector<9x256xf32>
    %cst = arith.constant 0.000000e+00 : f32
    %7 = vector.broadcast %cst : f32 to vector<4x17xf32>
    %c0_10 = arith.constant 0 : index
    %c0_11 = arith.constant 0 : index
    %c0_12 = arith.constant 0 : index
    %8 = vector.load %arg1[%c0_10, %c0_11, %c0_12] : memref<1x4x256xf32, #tpu.memory_space<vmem>>, vector<1x4x256xf32>
    %9 = vector.shape_cast %8 : vector<1x4x256xf32> to vector<4x256xf32>
    %10 = tpu.concatenate %7, %9, %7 in 1 : vector<4x17xf32>, vector<4x256xf32>, vector<4x17xf32> -> vector<4x290xf32>
    %11 = vector.extract_strided_slice %10 {offsets = [0, 0], sizes = [4, 256], strides = [1, 1]} : vector<4x290xf32> to vector<4x256xf32>
    %12 = vector.extract_strided_slice %6 {offsets = [0, 0], sizes = [1, 256], strides = [1, 1]} : vector<9x256xf32> to vector<1x256xf32>
    %13 = vector.broadcast %12 : vector<1x256xf32> to vector<4x256xf32>
    %14 = arith.mulf %11, %13 : vector<4x256xf32>
    %15 = vector.extract_strided_slice %10 {offsets = [0, 1], sizes = [4, 256], strides = [1, 1]} : vector<4x290xf32> to vector<4x256xf32>
    %16 = vector.extract_strided_slice %6 {offsets = [1, 0], sizes = [1, 256], strides = [1, 1]} : vector<9x256xf32> to vector<1x256xf32>
    %17 = vector.broadcast %16 : vector<1x256xf32> to vector<4x256xf32>
    %18 = arith.mulf %15, %17 : vector<4x256xf32>
    %19 = vector.extract_strided_slice %10 {offsets = [0, 2], sizes = [4, 256], strides = [1, 1]} : vector<4x290xf32> to vector<4x256xf32>
    %20 = vector.extract_strided_slice %6 {offsets = [2, 0], sizes = [1, 256], strides = [1, 1]} : vector<9x256xf32> to vector<1x256xf32>
    %21 = vector.broadcast %20 : vector<1x256xf32> to vector<4x256xf32>
    %22 = arith.mulf %19, %21 : vector<4x256xf32>
    %23 = vector.extract_strided_slice %10 {offsets = [0, 16], sizes = [4, 256], strides = [1, 1]} : vector<4x290xf32> to vector<4x256xf32>
    %24 = vector.extract_strided_slice %6 {offsets = [3, 0], sizes = [1, 256], strides = [1, 1]} : vector<9x256xf32> to vector<1x256xf32>
    %25 = vector.broadcast %24 : vector<1x256xf32> to vector<4x256xf32>
    %26 = arith.mulf %23, %25 : vector<4x256xf32>
    %27 = vector.extract_strided_slice %10 {offsets = [0, 17], sizes = [4, 256], strides = [1, 1]} : vector<4x290xf32> to vector<4x256xf32>
    %28 = vector.extract_strided_slice %10 {offsets = [0, 18], sizes = [4, 256], strides = [1, 1]} : vector<4x290xf32> to vector<4x256xf32>
    %29 = vector.extract_strided_slice %6 {offsets = [5, 0], sizes = [1, 256], strides = [1, 1]} : vector<9x256xf32> to vector<1x256xf32>
    %30 = vector.broadcast %29 : vector<1x256xf32> to vector<4x256xf32>
    %31 = arith.mulf %28, %30 : vector<4x256xf32>
    %32 = vector.extract_strided_slice %10 {offsets = [0, 32], sizes = [4, 256], strides = [1, 1]} : vector<4x290xf32> to vector<4x256xf32>
    %33 = vector.extract_strided_slice %6 {offsets = [6, 0], sizes = [1, 256], strides = [1, 1]} : vector<9x256xf32> to vector<1x256xf32>
    %34 = vector.broadcast %33 : vector<1x256xf32> to vector<4x256xf32>
    %35 = arith.mulf %32, %34 : vector<4x256xf32>
    %36 = vector.extract_strided_slice %10 {offsets = [0, 33], sizes = [4, 256], strides = [1, 1]} : vector<4x290xf32> to vector<4x256xf32>
    %37 = vector.extract_strided_slice %6 {offsets = [7, 0], sizes = [1, 256], strides = [1, 1]} : vector<9x256xf32> to vector<1x256xf32>
    %38 = vector.broadcast %37 : vector<1x256xf32> to vector<4x256xf32>
    %39 = arith.mulf %36, %38 : vector<4x256xf32>
    %40 = vector.extract_strided_slice %10 {offsets = [0, 34], sizes = [4, 256], strides = [1, 1]} : vector<4x290xf32> to vector<4x256xf32>
    %41 = vector.extract_strided_slice %6 {offsets = [8, 0], sizes = [1, 256], strides = [1, 1]} : vector<9x256xf32> to vector<1x256xf32>
    %42 = vector.broadcast %41 : vector<1x256xf32> to vector<4x256xf32>
    %43 = arith.mulf %40, %42 : vector<4x256xf32>
    %44 = tpu.concatenate %14, %18, %22, %26, %27, %31, %35, %39, %43 in 0 : vector<4x256xf32>, vector<4x256xf32>, vector<4x256xf32>, vector<4x256xf32>, vector<4x256xf32>, vector<4x256xf32>, vector<4x256xf32>, vector<4x256xf32>, vector<4x256xf32> -> vector<36x256xf32>
    %45 = arith.truncf %44 : vector<36x256xf32> to vector<36x256xbf16>
    %cst_13 = arith.constant dense<0.000000e+00> : vector<4x256xf32>
    %46 = tpu.matmul %0, %45, %cst_13 {dimension_numbers = #tpu.dot_dimension_numbers<[1], [0], [0], [1], [0, 0, 1, 1], [], []>} : vector<4x36xbf16>, vector<36x256xbf16>, vector<4x256xf32> -> vector<4x256xf32>
    %47 = vector.broadcast %3 : vector<4x1xf32> to vector<4x256xf32>
    %48 = arith.addf %46, %47 : vector<4x256xf32>
    %cst_14 = arith.constant 0.000000e+00 : f32
    %49 = vector.broadcast %cst_14 : f32 to vector<4x256xf32>
    %50 = arith.maximumf %48, %49 : vector<4x256xf32>
    %51 = tpu.concatenate %7, %50, %7 in 1 : vector<4x17xf32>, vector<4x256xf32>, vector<4x17xf32> -> vector<4x290xf32>
    %52 = vector.extract_strided_slice %51 {offsets = [0, 0], sizes = [4, 256], strides = [1, 1]} : vector<4x290xf32> to vector<4x256xf32>
    %53 = vector.extract_strided_slice %6 {offsets = [0, 0], sizes = [1, 256], strides = [1, 1]} : vector<9x256xf32> to vector<1x256xf32>
    %54 = vector.broadcast %53 : vector<1x256xf32> to vector<4x256xf32>
    %55 = arith.mulf %52, %54 : vector<4x256xf32>
    %56 = vector.extract_strided_slice %51 {offsets = [0, 1], sizes = [4, 256], strides = [1, 1]} : vector<4x290xf32> to vector<4x256xf32>
    %57 = vector.extract_strided_slice %6 {offsets = [1, 0], sizes = [1, 256], strides = [1, 1]} : vector<9x256xf32> to vector<1x256xf32>
    %58 = vector.broadcast %57 : vector<1x256xf32> to vector<4x256xf32>
    %59 = arith.mulf %56, %58 : vector<4x256xf32>
    %60 = vector.extract_strided_slice %51 {offsets = [0, 2], sizes = [4, 256], strides = [1, 1]} : vector<4x290xf32> to vector<4x256xf32>
    %61 = vector.extract_strided_slice %6 {offsets = [2, 0], sizes = [1, 256], strides = [1, 1]} : vector<9x256xf32> to vector<1x256xf32>
    %62 = vector.broadcast %61 : vector<1x256xf32> to vector<4x256xf32>
    %63 = arith.mulf %60, %62 : vector<4x256xf32>
    %64 = vector.extract_strided_slice %51 {offsets = [0, 16], sizes = [4, 256], strides = [1, 1]} : vector<4x290xf32> to vector<4x256xf32>
    %65 = vector.extract_strided_slice %6 {offsets = [3, 0], sizes = [1, 256], strides = [1, 1]} : vector<9x256xf32> to vector<1x256xf32>
    %66 = vector.broadcast %65 : vector<1x256xf32> to vector<4x256xf32>
    %67 = arith.mulf %64, %66 : vector<4x256xf32>
    %68 = vector.extract_strided_slice %51 {offsets = [0, 17], sizes = [4, 256], strides = [1, 1]} : vector<4x290xf32> to vector<4x256xf32>
    %69 = vector.extract_strided_slice %51 {offsets = [0, 18], sizes = [4, 256], strides = [1, 1]} : vector<4x290xf32> to vector<4x256xf32>
    %70 = vector.extract_strided_slice %6 {offsets = [5, 0], sizes = [1, 256], strides = [1, 1]} : vector<9x256xf32> to vector<1x256xf32>
    %71 = vector.broadcast %70 : vector<1x256xf32> to vector<4x256xf32>
    %72 = arith.mulf %69, %71 : vector<4x256xf32>
    %73 = vector.extract_strided_slice %51 {offsets = [0, 32], sizes = [4, 256], strides = [1, 1]} : vector<4x290xf32> to vector<4x256xf32>
    %74 = vector.extract_strided_slice %6 {offsets = [6, 0], sizes = [1, 256], strides = [1, 1]} : vector<9x256xf32> to vector<1x256xf32>
    %75 = vector.broadcast %74 : vector<1x256xf32> to vector<4x256xf32>
    %76 = arith.mulf %73, %75 : vector<4x256xf32>
    %77 = vector.extract_strided_slice %51 {offsets = [0, 33], sizes = [4, 256], strides = [1, 1]} : vector<4x290xf32> to vector<4x256xf32>
    %78 = vector.extract_strided_slice %6 {offsets = [7, 0], sizes = [1, 256], strides = [1, 1]} : vector<9x256xf32> to vector<1x256xf32>
    %79 = vector.broadcast %78 : vector<1x256xf32> to vector<4x256xf32>
    %80 = arith.mulf %77, %79 : vector<4x256xf32>
    %81 = vector.extract_strided_slice %51 {offsets = [0, 34], sizes = [4, 256], strides = [1, 1]} : vector<4x290xf32> to vector<4x256xf32>
    %82 = vector.extract_strided_slice %6 {offsets = [8, 0], sizes = [1, 256], strides = [1, 1]} : vector<9x256xf32> to vector<1x256xf32>
    %83 = vector.broadcast %82 : vector<1x256xf32> to vector<4x256xf32>
    %84 = arith.mulf %81, %83 : vector<4x256xf32>
    %85 = tpu.concatenate %55, %59, %63, %67, %68, %72, %76, %80, %84 in 0 : vector<4x256xf32>, vector<4x256xf32>, vector<4x256xf32>, vector<4x256xf32>, vector<4x256xf32>, vector<4x256xf32>, vector<4x256xf32>, vector<4x256xf32>, vector<4x256xf32> -> vector<36x256xf32>
    %86 = arith.truncf %85 : vector<36x256xf32> to vector<36x256xbf16>
    %cst_15 = arith.constant dense<0.000000e+00> : vector<4x256xf32>
    %87 = tpu.matmul %1, %86, %cst_15 {dimension_numbers = #tpu.dot_dimension_numbers<[1], [0], [0], [1], [0, 0, 1, 1], [], []>} : vector<4x36xbf16>, vector<36x256xbf16>, vector<4x256xf32> -> vector<4x256xf32>
    %88 = vector.broadcast %5 : vector<4x1xf32> to vector<4x256xf32>
    %89 = arith.addf %87, %88 : vector<4x256xf32>
    %90 = arith.addf %89, %9 : vector<4x256xf32>
    %cst_16 = arith.constant 0.000000e+00 : f32
    %91 = vector.broadcast %cst_16 : f32 to vector<4x256xf32>
    %92 = arith.maximumf %90, %91 : vector<4x256xf32>
    %c0_17 = arith.constant 0 : index
    %c0_18 = arith.constant 0 : index
    %c0_19 = arith.constant 0 : index
    %93 = vector.load %arg6[%c0_17, %c0_18, %c0_19] : memref<1x4x256xf32, #tpu.memory_space<vmem>>, vector<1x4x256xf32>
    %94 = vector.shape_cast %93 : vector<1x4x256xf32> to vector<4x256xf32>
    %95 = vector.shape_cast %92 : vector<4x256xf32> to vector<1x4x256xf32>
    tpu.vector_store %arg6[%c0_17, %c0_18, %c0_19], %95 {strides = array<i32>} : memref<1x4x256xf32, #tpu.memory_space<vmem>>, vector<1x4x256xf32>,
    return
  }
  func.func @transform_0(%arg0: i32) -> (i32, i32, i32) {
    %c0_i32 = arith.constant 0 : i32
    %c0_i32_0 = arith.constant 0 : i32
    %c0_i32_1 = arith.constant 0 : i32
    return %arg0, %c0_i32, %c0_i32_0 : i32, i32, i32
  }
  func.func @transform_1(%arg0: i32) -> (i32, i32) {
    %c0_i32 = arith.constant 0 : i32
    %c0_i32_0 = arith.constant 0 : i32
    %c0_i32_1 = arith.constant 0 : i32
    return %c0_i32, %c0_i32_0 : i32, i32
  }
  func.func @transform_2(%arg0: i32) -> (i32, i32) {
    %c0_i32 = arith.constant 0 : i32
    %c0_i32_0 = arith.constant 0 : i32
    %c0_i32_1 = arith.constant 0 : i32
    return %c0_i32, %c0_i32_0 : i32, i32
  }
  func.func @transform_3(%arg0: i32) -> (i32, i32, i32) {
    %c0_i32 = arith.constant 0 : i32
    %c0_i32_0 = arith.constant 0 : i32
    %c0_i32_1 = arith.constant 0 : i32
    %c0_i32_2 = arith.constant 0 : i32
    return %c0_i32, %c0_i32_0, %c0_i32_1 : i32, i32, i32
  }
  func.func @transform_4(%arg0: i32) -> (i32, i32) {
    %c0_i32 = arith.constant 0 : i32
    %c0_i32_0 = arith.constant 0 : i32
    %c0_i32_1 = arith.constant 0 : i32
    return %c0_i32, %c0_i32_0 : i32, i32
  }
  func.func @transform_5(%arg0: i32) -> (i32, i32, i32) {
    %c0_i32 = arith.constant 0 : i32
    %c0_i32_0 = arith.constant 0 : i32
    %c0_i32_1 = arith.constant 0 : i32
    return %arg0, %c0_i32, %c0_i32_0 : i32, i32, i32
  }
}

</mosaic_0001>

<llo_original>
// kernel: tpu_custom_call.1
$region0: #{tpu_custom_call.1}
  #allocation0 [shape = 'u32[]', space=smem, size = 0x4, offset = 0x4, fixed_abs, tag = 'smem constant byte address 0x4 - core index']
  #allocation1 [shape = 'u32[144,128]{1,0:T(1,128)}', space=vmem, size = 0x12000, scoped, tag = 'internal scratch']
  %s0 = inlined_call_operand.hbm [shape: f32[2,4,256], index: 0, kind: input, shape index: {}]
  %s1 = inlined_call_operand.vmem [shape: bf16[4,36], index: 1, kind: input, shape index: {}]
  %s2 = inlined_call_operand.vmem [shape: bf16[4,36], index: 2, kind: input, shape index: {}]
  %s3 = inlined_call_operand.vmem [shape: f32[2,4,1], index: 3, kind: input, shape index: {}]
  %s4 = inlined_call_operand.hbm [shape: f32[9,256], index: 4, kind: input, shape index: {}]
  %s5 = inlined_call_operand.hbm [shape: f32[2,4,256], index: 5, kind: output, shape index: {}]
  %s6 = sld [smem:[#allocation0]]
  $region61: #{tpu_custom_call.1} parent=0
    _
  %s8 = ssub.s32 1, %s6
  %s9 = scalar_select 0, %s8, %s6
  $region1: #{tpu_custom_call.1} parent=0
    #allocation2 [shape = 'u8[8192]{0}', space=vmem, size = 0x2000, scoped, tag = 'input window, operand 0']
    #allocation3 [shape = 's32[2]{0}', space=sflag, size = 0x8, scoped, tag = 'scoped memory for tpu_custom_call.1']
    #allocation4 [shape = 's32[2]{0}', space=sflag, size = 0x8, scoped, tag = 'scoped memory for tpu_custom_call.1']
    #allocation5 [shape = 'u8[16384]{0}', space=vmem, size = 0x4000, scoped, tag = 'input window, operand 4, single buffered']
    #allocation6 [shape = 's32[1]{0}', space=sflag, size = 0x4, scoped, tag = 'scoped memory for tpu_custom_call.1']
    #allocation7 [shape = 'u8[8192]{0}', space=vmem, size = 0x2000, scoped, tag = 'output window, operand 0']
    %10 = vsyncpa [#allocation3], 0
    %s11 = scalar_lea.sflag [#allocation3], 1
    %12 = vsyncpa %s11, 0
    %13 = vsyncpa [#allocation6], 0
    %14 = vsyncpa [#allocation4], 0
    %s15 = scalar_lea.sflag [#allocation4], 1
    %16 = vsyncpa %s15, 0
    loop: start=0, step=1, limit=4
    $region2: #{tpu_custom_call.1} parent=1 // loop_pre_header
      _
    $region3: #{tpu_custom_call.1} parent=1 // loop_header
      %s18 = sphi 0, %s22
      %p19 = scmp.ge.s32.totalorder %s18, 4
      %s28 = sphi 0, %s30
      %s31 = sphi 0, %s28
      %s32 = sphi 0, %s31
      %s48 = sphi 0, %s32
      %s52 = sphi 0, %s52
      %s54 = sphi 0, %s52
      %s55 = sphi 0, %s54
      %s69 = sphi 0, %s55
      %s73 = sphi 0, %s73
      %s75 = sphi 0, %s73
      %s76 = sphi 0, %s75
      %s90 = sphi 0, %s76
      %s94 = sphi 0, %s94
      %s96 = sphi 0, %s94
      %s97 = sphi 0, %s96
      %s111 = sphi 0, %s97
      %s115 = sphi 0, %s115
      %s117 = sphi 0, %s115
      %s118 = sphi 0, %s117
      %s132 = sphi 0, %s118
      %s138 = sphi 0, %s140
      %s141 = sphi 0, %s138
      %s142 = sphi 0, %s141
      %s158 = sphi 0, %s142
    $region4: #{tpu_custom_call.1} parent=1 // loop_header_branch
      %21 = sbr.rel (%p19) target = $region8
    $region5: #{tpu_custom_call.1} parent=1 // loop_body
      %s23 = ssub.s32 %s18, 1
      %s24 = ssub.s32 %s18, 2
      %s25 = sadd.s32 %s18, 1
      %s26 = ssub.s32 %s18, %s25
      %p27 = scmp.eq.s32.totalorder %s26, 0
      %s29 = sadd.s32 %s28, 1
      %s30 = scalar_select %p27, %s28, %s29
      %p33 = pneg %p27
      %p34 = scmp.eq.s32.totalorder %s18, 1
      %p35 = por %p33, %p34
      %p36 = scmp.ne.s32.totalorder %s28, %s31
      %p37 = scmp.eq.s32.totalorder %s18, 0
      %p38 = por %p36, %p37
      %p39 = scmp.ne.s32.totalorder %s28, %s31
      %p40 = scmp.eq.s32.totalorder %s23, 1
      %p41 = por %p39, %p40
      %p42 = scmp.ne.s32.totalorder %s31, %s32
      %p43 = scmp.eq.s32.totalorder %s23, 0
      %p44 = por %p42, %p43
      %p45 = scmp.ne.s32.totalorder %s31, %s32
      %p46 = scmp.eq.s32.totalorder %s24, 1
      %p47 = por %p45, %p46
      %p49 = scmp.ne.s32.totalorder %s32, %s48
      %p50 = scmp.eq.s32.totalorder %s24, 0
      %p51 = por %p49, %p50
      %s53 = sadd.s32 %s52, 1
      %p56 = scmp.eq.s32.totalorder %s18, 1
      %p57 = scmp.ne.s32.totalorder %s52, %s54
      %p58 = scmp.eq.s32.totalorder %s18, 0
      %p59 = por %p57, %p58
      %p60 = scmp.ne.s32.totalorder %s52, %s54
      %p61 = scmp.eq.s32.totalorder %s23, 1
      %p62 = por %p60, %p61
      %p63 = scmp.ne.s32.totalorder %s54, %s55
      %p64 = scmp.eq.s32.totalorder %s23, 0
      %p65 = por %p63, %p64
      %p66 = scmp.ne.s32.totalorder %s54, %s55
      %p67 = scmp.eq.s32.totalorder %s24, 1
      %p68 = por %p66, %p67
      %p70 = scmp.ne.s32.totalorder %s55, %s69
      %p71 = scmp.eq.s32.totalorder %s24, 0
      %p72 = por %p70, %p71
      %s74 = sadd.s32 %s73, 1
      %p77 = scmp.eq.s32.totalorder %s18, 1
      %p78 = scmp.ne.s32.totalorder %s73, %s75
      %p79 = scmp.eq.s32.totalorder %s18, 0
      %p80 = por %p78, %p79
      %p81 = scmp.ne.s32.totalorder %s73, %s75
      %p82 = scmp.eq.s32.totalorder %s23, 1
      %p83 = por %p81, %p82
      %p84 = scmp.ne.s32.totalorder %s75, %s76
      %p85 = scmp.eq.s32.totalorder %s23, 0
      %p86 = por %p84, %p85
      %p87 = scmp.ne.s32.totalorder %s75, %s76
      %p88 = scmp.eq.s32.totalorder %s24, 1
      %p89 = por %p87, %p88
      %p91 = scmp.ne.s32.totalorder %s76, %s90
      %p92 = scmp.eq.s32.totalorder %s24, 0
      %p93 = por %p91, %p92
      %s95 = sadd.s32 %s94, 1
      %p98 = scmp.eq.s32.totalorder %s18, 1
      %p99 = scmp.ne.s32.totalorder %s94, %s96
      %p100 = scmp.eq.s32.totalorder %s18, 0
      %p101 = por %p99, %p100
      %p102 = scmp.ne.s32.totalorder %s94, %s96
      %p103 = scmp.eq.s32.totalorder %s23, 1
      %p104 = por %p102, %p103
      %p105 = scmp.ne.s32.totalorder %s96, %s97
      %p106 = scmp.eq.s32.totalorder %s23, 0
      %p107 = por %p105, %p106
      %p108 = scmp.ne.s32.totalorder %s96, %s97
      %p109 = scmp.eq.s32.totalorder %s24, 1
      %p110 = por %p108, %p109
      %p112 = scmp.ne.s32.totalorder %s97, %s111
      %p113 = scmp.eq.s32.totalorder %s24, 0
      %p114 = por %p112, %p113
      %s116 = sadd.s32 %s115, 1
      %p119 = scmp.eq.s32.totalorder %s18, 1
      %p120 = scmp.ne.s32.totalorder %s115, %s117
      %p121 = scmp.eq.s32.totalorder %s18, 0
      %p122 = por %p120, %p121
      %p123 = scmp.ne.s32.totalorder %s115, %s117
      %p124 = scmp.eq.s32.totalorder %s23, 1
      %p125 = por %p123, %p124
      %p126 = scmp.ne.s32.totalorder %s117, %s118
      %p127 = scmp.eq.s32.totalorder %s23, 0
      %p128 = por %p126, %p127
      %p129 = scmp.ne.s32.totalorder %s117, %s118
      %p130 = scmp.eq.s32.totalorder %s24, 1
      %p131 = por %p129, %p130
      %p133 = scmp.ne.s32.totalorder %s118, %s132
      %p134 = scmp.eq.s32.totalorder %s24, 0
      %p135 = por %p133, %p134
      %s136 = ssub.s32 %s18, %s25
      %p137 = scmp.eq.s32.totalorder %s136, 0
      %s139 = sadd.s32 %s138, 1
      %s140 = scalar_select %p137, %s138, %s139
      %p143 = pneg %p137
      %p144 = scmp.eq.s32.totalorder %s18, 1
      %p145 = por %p143, %p144
      %p146 = scmp.ne.s32.totalorder %s138, %s141
      %p147 = scmp.eq.s32.totalorder %s18, 0
      %p148 = por %p146, %p147
      %p149 = scmp.ne.s32.totalorder %s138, %s141
      %p150 = scmp.eq.s32.totalorder %s23, 1
      %p151 = por %p149, %p150
      %p152 = scmp.ne.s32.totalorder %s141, %s142
      %p153 = scmp.eq.s32.totalorder %s23, 0
      %p154 = por %p152, %p153
      %p155 = scmp.ne.s32.totalorder %s141, %s142
      %p156 = scmp.eq.s32.totalorder %s24, 1
      %p157 = por %p155, %p156
      %p159 = scmp.ne.s32.totalorder %s142, %s158
      %p160 = scmp.eq.s32.totalorder %s24, 0
      %p161 = por %p159, %p160
      %p162 = scmp.le.s32.totalorder 1, %s18
      %p163 = scmp.lt.s32.totalorder %s18, 3
      %p164 = pnand %p162, %p163
      %p165 = pneg %p164
      // Predicated region
      $region9: #{tpu_custom_call.1} parent=5 // pred_check
        _
      $region10: #{tpu_custom_call.1} parent=5 // pred_check_branch
        %167 = sbr.rel (%p164) target = $region12
      $region11: #{tpu_custom_call.1} parent=5 // pred_region
        %s168 = ssub.s32 %s18, 1
        // Predicated region
        $region13: #{tpu_custom_call.1} parent=11 // pred_check
          %p169 = pneg %p65
        $region14: #{tpu_custom_call.1} parent=11 // pred_check_branch
          %171 = sbr.rel (%p169) target = $region16
        $region15: #{tpu_custom_call.1} parent=11 // pred_region
          _
        $region16: #{tpu_custom_call.1} parent=11 // pred_fallthru
          _
        // Predicated region
        $region17: #{tpu_custom_call.1} parent=11 // pred_check
          %p172 = pneg %p86
        $region18: #{tpu_custom_call.1} parent=11 // pred_check_branch
          %174 = sbr.rel (%p172) target = $region20
        $region19: #{tpu_custom_call.1} parent=11 // pred_region
          _
        $region20: #{tpu_custom_call.1} parent=11 // pred_fallthru
          _
        // Predicated region
        $region21: #{tpu_custom_call.1} parent=11 // pred_check
          %p175 = pneg %p107
        $region22: #{tpu_custom_call.1} parent=11 // pred_check_branch
          %177 = sbr.rel (%p175) target = $region24
        $region23: #{tpu_custom_call.1} parent=11 // pred_region
          _
        $region24: #{tpu_custom_call.1} parent=11 // pred_fallthru
          _
        // Predicated region
        $region25: #{tpu_custom_call.1} parent=11 // pred_check
          %p178 = pneg %p128
        $region26: #{tpu_custom_call.1} parent=11 // pred_check_branch
          %180 = sbr.rel (%p178) target = $region28
        $region27: #{tpu_custom_call.1} parent=11 // pred_region
          %s182 = ssub.s32 512, 512
          %183 = vsyncadd [#allocation6], %s182
          %s184 = sshll.u32 [#allocation5], 4
          %s185 = int_to_ptr.vmem [resolvable:$true] %s184
          %190 = dma.hbm_to_vmem [thread:$0]  %s4, 512, %s185, [#allocation6], 256, 256, 16
        $region28: #{tpu_custom_call.1} parent=11 // pred_fallthru
          _
      $region12: #{tpu_custom_call.1} parent=5 // pred_fallthru
        _
      %p191 = scmp.lt.s32.totalorder %s18, 2
      // Predicated region
      $region29: #{tpu_custom_call.1} parent=5 // pred_check
        %p192 = pneg %p191
      $region30: #{tpu_custom_call.1} parent=5 // pred_check_branch
        %194 = sbr.rel (%p192) target = $region32
      $region31: #{tpu_custom_call.1} parent=5 // pred_region
        // Predicated region
        $region33: #{tpu_custom_call.1} parent=31 // pred_check
          %p195 = pneg %p38
        $region34: #{tpu_custom_call.1} parent=31 // pred_check_branch
          %197 = sbr.rel (%p195) target = $region36
        $region35: #{tpu_custom_call.1} parent=31 // pred_region
          %s198 = sand.u32 %s28, 1
          %s199 = scalar_lea.sflag [#allocation3], %s198
          %s200 = sand.u32 %s28, 1
          %s201 = smul.addr %s200, 8
          %s202 = scalar_lea.vmem [#allocation2], %s201
          %s204 = ssub.s32 128, 128
          %205 = vsyncadd %s199, %s204
          %s206 = smul.addr %s18, 2
          %s207 = smul.addr %s206, 64
          %s208 = scalar_lea.hbm %s0, %s207
          %s210 = sshll.u32 %s202, 4
          %s211 = int_to_ptr.vmem [resolvable:$true] %s210
          %213 = dma.hbm_to_vmem [thread:$0]  %s208, 128, %s211, %s199
        $region36: #{tpu_custom_call.1} parent=31 // pred_fallthru
          _
      $region32: #{tpu_custom_call.1} parent=5 // pred_fallthru
        _
      %p214 = scmp.le.s32.totalorder 1, %s18
      %p215 = scmp.lt.s32.totalorder %s18, 3
      %p216 = pnand %p214, %p215
      %p217 = pneg %p216
      // Predicated region
      $region37: #{tpu_custom_call.1} parent=5 // pred_check
        _
      $region38: #{tpu_custom_call.1} parent=5 // pred_check_branch
        %219 = sbr.rel (%p216) target = $region40
      $region39: #{tpu_custom_call.1} parent=5 // pred_region
        %s220 = ssub.s32 %s18, 1
        %s221 = sand.u32 %s31, 1
        %s222 = scalar_lea.sflag [#allocation3], %s221
        %s223 = sand.u32 %s31, 1
        %s224 = smul.addr %s223, 8
        %s225 = scalar_lea.vmem [#allocation2], %s224
        // Predicated region
        $region41: #{tpu_custom_call.1} parent=39 // pred_check
          %p226 = pneg %p44
        $region42: #{tpu_custom_call.1} parent=39 // pred_check_branch
          %228 = sbr.rel (%p226) target = $region44
        $region43: #{tpu_custom_call.1} parent=39 // pred_region
          %229 = dma.done %s222, 128
        $region44: #{tpu_custom_call.1} parent=39 // pred_fallthru
          _
        // Predicated region
        $region45: #{tpu_custom_call.1} parent=39 // pred_check
          %p230 = pneg %p128
        $region46: #{tpu_custom_call.1} parent=39 // pred_check_branch
          %232 = sbr.rel (%p230) target = $region48
        $region47: #{tpu_custom_call.1} parent=39 // pred_region
          %233 = dma.done [#allocation6], 512
        $region48: #{tpu_custom_call.1} parent=39 // pred_fallthru
          _
        %s234 = sand.u32 %s31, 1
        %s235 = scalar_lea.sflag [#allocation3], %s234
        %s236 = sand.u32 %s31, 1
        %s237 = smul.addr %s236, 8
        %s238 = scalar_lea.vmem [#allocation2], %s237
        %p239 = pneg %p44
        %p240 = pneg %p41
        %p241 = pneg %p65
        %p242 = pneg %p62
        %p243 = pneg %p86
        %p244 = pneg %p83
        %p245 = pneg %p107
        %p246 = pneg %p104
        %p247 = pneg %p128
        %p248 = pneg %p125
        %p249 = pneg %p154
        %p250 = pneg %p151
        %s251 = sand.u32 %s141, 1
        %s252 = scalar_lea.sflag [#allocation4], %s251
        %s253 = sand.u32 %s141, 1
        %s254 = smul.addr %s253, 8
        %s255 = scalar_lea.vmem [#allocation7], %s254
        %v257 = vld [vmem:[%s1] sm:$0x3]
        %v258 = vld [vmem:[%s2] sm:$0x3]
        %v259 = vld [vmem:[%s3] sm:$0xf]
        %s260 = scalar_lea.vmem %s3, 4
        %v261 = vld [vmem:[%s260] sm:$0xf]
        %v262 = vld [vmem:[#allocation5] sm:$0xff]
        %v263 = vld [vmem:[#allocation5 + $0x8] sm:$0xff]
        %v264 = vld [vmem:[#allocation5 + $0x10] sm:$0x1]
        %v265 = vld [vmem:[#allocation5 + $0x18] sm:$0x1]
        %v266 = vld [vmem:[%s225] sm:$0xff]
        %v268 = vcombine.high %v266, %v266
        %269 = vrot.lane.b32.xlu0 %v266, 17
        %v270 = vpop.permute.xlu0 %269
        %271 = vrot.lane.b32.xlu0 %v268, 17
        %v272 = vpop.permute.xlu0 %271
        %vm273 = vcmask 138240
        %v274 = vsel %vm273, %v270, %v272
        %v278 = vsel %vm273, 0.0, %v270
        %v279 = vsel %vm273, %v272, 0.0
        %v280 = vlaneseq
        %v281 = vshrl.u32 %v280, 7
        %v282 = vsub.s32 0, %v281
        %v283 = vrot.slane %v262, %v282
        %v284 = vlaneseq
        %v285 = vshrl.u32 %v284, 7
        %v286 = vsub.s32 0, %v285
        %v287 = vrot.slane %v263, %v286
        %v288 = vmul.f32 %v278, %v283
        %v289 = vmul.f32 %v274, %v287
        %v290 = vlaneseq
        %v291 = vshrl.u32 %v290, 7
        %v292 = vsub.s32 1, %v291
        %v293 = vrot.slane %v262, %v292
        %v294 = vlaneseq
        %v295 = vshrl.u32 %v294, 7
        %v296 = vsub.s32 1, %v295
        %v297 = vrot.slane %v263, %v296
        %300 = vrot.lane.b32.xlu0 %v293, 1
        %v301 = vpop.permute.xlu0 %300
        %302 = vrot.lane.b32.xlu0 %v297, 1
        %v303 = vpop.permute.xlu0 %302
        %vm304 = vcmask 7168
        %v305 = vsel %vm304, %v301, %v303
        %v309 = vmul.f32 %v278, %v301
        %v310 = vmul.f32 %v274, %v305
        %v311 = vmul.f32 %v279, %v303
        %v312 = vlaneseq
        %v313 = vshrl.u32 %v312, 7
        %v314 = vsub.s32 2, %v313
        %v315 = vrot.slane %v262, %v314
        %v316 = vlaneseq
        %v317 = vshrl.u32 %v316, 7
        %v318 = vsub.s32 2, %v317
        %v319 = vrot.slane %v263, %v318
        %322 = vrot.lane.b32.xlu0 %v315, 2
        %v323 = vpop.permute.xlu0 %322
        %324 = vrot.lane.b32.xlu0 %v319, 2
        %v325 = vpop.permute.xlu0 %324
        %vm326 = vcmask 15360
        %v327 = vsel %vm326, %v323, %v325
        %v331 = vmul.f32 %v278, %v323
        %v332 = vmul.f32 %v274, %v327
        %v333 = vmul.f32 %v279, %v325
        %v334 = vlaneseq
        %v335 = vshrl.u32 %v334, 7
        %v336 = vsub.s32 3, %v335
        %v337 = vrot.slane %v262, %v336
        %v338 = vlaneseq
        %v339 = vshrl.u32 %v338, 7
        %v340 = vsub.s32 3, %v339
        %v341 = vrot.slane %v263, %v340
        %344 = vrot.lane.b32.xlu0 %v337, 16
        %v345 = vpop.permute.xlu0 %344
        %346 = vrot.lane.b32.xlu0 %v341, 16
        %v347 = vpop.permute.xlu0 %346
        %vm348 = vcmask 130048
        %v349 = vsel %vm348, %v345, %v347
        %v353 = vmul.f32 %v278, %v345
        %v354 = vmul.f32 %v274, %v349
        %v355 = vmul.f32 %v279, %v347
        %v356 = vlaneseq
        %v357 = vshrl.u32 %v356, 7
        %v358 = vsub.s32 5, %v357
        %v359 = vrot.slane %v262, %v358
        %v360 = vlaneseq
        %v361 = vshrl.u32 %v360, 7
        %v362 = vsub.s32 5, %v361
        %v363 = vrot.slane %v263, %v362
        %366 = vrot.lane.b32.xlu0 %v359, 18
        %v367 = vpop.permute.xlu0 %366
        %368 = vrot.lane.b32.xlu0 %v363, 18
        %v369 = vpop.permute.xlu0 %368
        %vm370 = vcmask 146432
        %v371 = vsel %vm370, %v367, %v369
        %v375 = vmul.f32 %v278, %v367
        %v376 = vmul.f32 %v274, %v371
        %v377 = vmul.f32 %v279, %v369
        %v378 = vlaneseq
        %v379 = vshrl.u32 %v378, 7
        %v380 = vsub.s32 6, %v379
        %v381 = vrot.slane %v262, %v380
        %v382 = vlaneseq
        %v383 = vshrl.u32 %v382, 7
        %v384 = vsub.s32 6, %v383
        %v385 = vrot.slane %v263, %v384
        %388 = vrot.lane.b32.xlu0 %v381, 32
        %v389 = vpop.permute.xlu0 %388
        %390 = vrot.lane.b32.xlu0 %v385, 32
        %v391 = vpop.permute.xlu0 %390
        %vm392 = vcmask 261120
        %v393 = vsel %vm392, %v389, %v391
        %v397 = vmul.f32 %v278, %v389
        %v398 = vmul.f32 %v274, %v393
        %v399 = vmul.f32 %v279, %v391
        %v400 = vlaneseq
        %v401 = vshrl.u32 %v400, 7
        %v402 = vsub.s32 7, %v401
        %v403 = vrot.slane %v262, %v402
        %v404 = vlaneseq
        %v405 = vshrl.u32 %v404, 7
        %v406 = vsub.s32 7, %v405
        %v407 = vrot.slane %v263, %v406
        %410 = vrot.lane.b32.xlu0 %v403, 33
        %v411 = vpop.permute.xlu0 %410
        %412 = vrot.lane.b32.xlu0 %v407, 33
        %v413 = vpop.permute.xlu0 %412
        %vm414 = vcmask 269312
        %v415 = vsel %vm414, %v411, %v413
        %v419 = vmul.f32 %v278, %v411
        %v420 = vmul.f32 %v274, %v415
        %v421 = vmul.f32 %v279, %v413
        %v422 = vlaneseq
        %v423 = vshrl.u32 %v422, 7
        %v424 = vsub.s32 0, %v423
        %v425 = vrot.slane %v264, %v424
        %v426 = vlaneseq
        %v427 = vshrl.u32 %v426, 7
        %v428 = vsub.s32 0, %v427
        %v429 = vrot.slane %v265, %v428
        %432 = vrot.lane.b32.xlu0 %v425, 34
        %v433 = vpop.permute.xlu0 %432
        %434 = vrot.lane.b32.xlu0 %v429, 34
        %v435 = vpop.permute.xlu0 %434
        %vm436 = vcmask 277504
        %v437 = vsel %vm436, %v433, %v435
        %v441 = vmul.f32 %v278, %v433
        %v442 = vmul.f32 %v274, %v437
        %v443 = vmul.f32 %v279, %v435
        %v447 = vrot.slane %v309, 4
        %v448 = vrot.slane %v310, 4
        %v449 = vrot.slane %v311, 4
        %450 = vrot.lane.b32.xlu0 %v447, 127
        %v451 = vpop.permute.xlu0 %450
        %452 = vrot.lane.b32.xlu0 %v448, 127
        %v453 = vpop.permute.xlu0 %452
        %454 = vrot.lane.b32.xlu0 %v449, 127
        %v455 = vpop.permute.xlu0 %454
        %vm456 = vcmask 1039360
        %v457 = vsel %vm456, %v451, %v453
        %v458 = vsel %vm456, %v453, %v455
        %464 = vrot.lane.b32.xlu0 %v331, 126
        %v465 = vpop.permute.xlu0 %464
        %466 = vrot.lane.b32.xlu0 %v332, 126
        %v467 = vpop.permute.xlu0 %466
        %468 = vrot.lane.b32.xlu0 %v333, 126
        %v469 = vpop.permute.xlu0 %468
        %vm470 = vcmask 1031168
        %v471 = vsel %vm470, %v465, %v467
        %v472 = vsel %vm470, %v467, %v469
        %v478 = vrot.slane %v353, 4
        %v479 = vrot.slane %v354, 4
        %v480 = vrot.slane %v355, 4
        %481 = vrot.lane.b32.xlu0 %v478, 112
        %v482 = vpop.permute.xlu0 %481
        %483 = vrot.lane.b32.xlu0 %v479, 112
        %v484 = vpop.permute.xlu0 %483
        %485 = vrot.lane.b32.xlu0 %v480, 112
        %v486 = vpop.permute.xlu0 %485
        %vm487 = vcmask 916480
        %v488 = vsel %vm487, %v482, %v484
        %v489 = vsel %vm487, %v484, %v486
        %494 = vrot.lane.b32.xlu0 %v278, 111
        %v495 = vpop.permute.xlu0 %494
        %496 = vrot.lane.b32.xlu0 %v274, 111
        %v497 = vpop.permute.xlu0 %496
        %498 = vrot.lane.b32.xlu0 %v279, 111
        %v499 = vpop.permute.xlu0 %498
        %vm500 = vcmask 908288
        %v501 = vsel %vm500, %v495, %v497
        %v502 = vsel %vm500, %v497, %v499
        %v508 = vrot.slane %v375, 4
        %v509 = vrot.slane %v376, 4
        %v510 = vrot.slane %v377, 4
        %511 = vrot.lane.b32.xlu0 %v508, 110
        %v512 = vpop.permute.xlu0 %511
        %513 = vrot.lane.b32.xlu0 %v509, 110
        %v514 = vpop.permute.xlu0 %513
        %515 = vrot.lane.b32.xlu0 %v510, 110
        %v516 = vpop.permute.xlu0 %515
        %vm517 = vcmask 900096
        %v518 = vsel %vm517, %v512, %v514
        %v519 = vsel %vm517, %v514, %v516
        %525 = vrot.lane.b32.xlu0 %v397, 96
        %v526 = vpop.permute.xlu0 %525
        %527 = vrot.lane.b32.xlu0 %v398, 96
        %v528 = vpop.permute.xlu0 %527
        %529 = vrot.lane.b32.xlu0 %v399, 96
        %v530 = vpop.permute.xlu0 %529
        %vm531 = vcmask 785408
        %v532 = vsel %vm531, %v526, %v528
        %v533 = vsel %vm531, %v528, %v530
        %v539 = vrot.slane %v419, 4
        %v540 = vrot.slane %v420, 4
        %v541 = vrot.slane %v421, 4
        %542 = vrot.lane.b32.xlu0 %v539, 95
        %v543 = vpop.permute.xlu0 %542
        %544 = vrot.lane.b32.xlu0 %v540, 95
        %v545 = vpop.permute.xlu0 %544
        %546 = vrot.lane.b32.xlu0 %v541, 95
        %v547 = vpop.permute.xlu0 %546
        %vm548 = vcmask 777216
        %v549 = vsel %vm548, %v543, %v545
        %v550 = vsel %vm548, %v545, %v547
        %556 = vrot.lane.b32.xlu0 %v441, 94
        %v557 = vpop.permute.xlu0 %556
        %558 = vrot.lane.b32.xlu0 %v442, 94
        %v559 = vpop.permute.xlu0 %558
        %560 = vrot.lane.b32.xlu0 %v443, 94
        %v561 = vpop.permute.xlu0 %560
        %vm562 = vcmask 769024
        %v563 = vsel %vm562, %v557, %v559
        %v564 = vsel %vm562, %v559, %v561
        %vm567 = vcmask 1043456
        %v568 = vsel %vm567, %v288, %v457
        %v569 = vsel %vm567, %v289, %v458
        %v570 = vsel %vm567, %v471, %v488
        %v571 = vsel %vm567, %v472, %v489
        %v572 = vsel %vm567, %v501, %v518
        %v573 = vsel %vm567, %v502, %v519
        %v574 = vsel %vm567, %v532, %v549
        %v575 = vsel %vm567, %v533, %v550
        %v576 = vpack.c.bf16 %v570, %v568
        %v577 = vpack.c.bf16 %v571, %v569
        %v578 = vpack.c.bf16 %v574, %v572
        %v579 = vpack.c.bf16 %v575, %v573
        %v580 = vpack.c.bf16 %v563, %v563
        %v581 = vpack.c.bf16 %v564, %v564
        %583 = vset.pattern.permute.xlu0 0
        %584 = vperm.xlu0 %583, %v259
        %v585 = vpop.permute.xlu0 %584
        %vm587 = vcmask 293888
        %v589 = vsel %vm587, %v257, 0
        %vm591 = vcmask 1041408
        %v593 = vsel %vm591, %v580, 0
        %v596 = vsel %vm591, %v581, 0
        %598 = vmatprep.subr.bf16.mxu0 %v577
        %599 = vmatpush1.bf16.msra.mxu0 %v576
        %600 = vmatprep.subr.bf16.mxu0 %v579
        %601 = vmatpush1.bf16.msra.mxu0 %v578
        %602 = vmatprep.subr.bf16.mxu0 %v596
        %603 = vmatpush1.bf16.msra.mxu0 %v593
        %604 = vmatprep.subr.bf16.mxu0 0
        %605 = vmatpush1.bf16.msra.mxu0 0
        %606 = vmatprep.subr.bf16.mxu0 0
        %607 = vmatpush1.bf16.msra.mxu0 0
        %608 = vmatprep.subr.bf16.mxu0 0
        %609 = vmatpush1.bf16.msra.mxu0 0
        %610 = vmatprep.subr.bf16.mxu0 0
        %611 = vmatpush1.bf16.msra.mxu0 0
        %612 = vmatprep.subr.bf16.mxu0 0
        %613 = vmatpush1.bf16.msra.mxu0 0
        %614 = vmatprep.subr.bf16.mxu0 0
        %615 = vmatpush1.bf16.msra.mxu0 0
        %616 = vmatprep.subr.bf16.mxu0 0
        %617 = vmatpush1.bf16.msra.mxu0 0
        %618 = vmatprep.subr.bf16.mxu0 0
        %619 = vmatpush1.bf16.msra.mxu0 0
        %620 = vmatprep.subr.bf16.mxu0 0
        %621 = vmatpush1.bf16.msra.mxu0 0
        %622 = vmatprep.subr.bf16.mxu0 0
        %623 = vmatpush1.bf16.msra.mxu0 0
        %624 = vmatprep.subr.bf16.mxu0 0
        %625 = vmatpush1.bf16.msra.mxu0 0
        %626 = vmatprep.subr.bf16.mxu0 0
        %627 = vmatpush1.bf16.msra.mxu0 0
        %628 = vmatprep.subr.bf16.mxu0 0
        %629 = vmatpush1.bf16.msra.mxu0 0
        %630 = vmatprep.mubr.bf16.mxu0 0
        %631 = vmatmul.mubr.bf16.gmra.mrb[0].mxu0 %v589
        %v632 = vpop.f32.mrb[0].mxu0
        %v633 = vadd.f32 %v585, %v632
        %v634 = vpop.f32.mrb[0].mxu0
        %v635 = vadd.f32 %v585, %v634
        %v636 = vpop.f32.mrb[0].mxu0
        %v637 = vpop.f32.mrb[0].mxu0
        %638 = vdwg.mxu0
        %v639 = vmax.f32 %v633, 0.0
        %v640 = vmax.f32 %v635, 0.0
        %643 = vrot.lane.b32.xlu0 %v639, 17
        %v644 = vpop.permute.xlu0 %643
        %645 = vrot.lane.b32.xlu0 %v640, 17
        %v646 = vpop.permute.xlu0 %645
        %v647 = vsel %vm273, %v644, %v646
        %v651 = vsel %vm273, 0.0, %v644
        %v652 = vsel %vm273, %v646, 0.0
        %v653 = vmul.f32 %v651, %v283
        %v654 = vmul.f32 %v647, %v287
        %v655 = vmul.f32 %v651, %v301
        %v656 = vmul.f32 %v647, %v305
        %v657 = vmul.f32 %v652, %v303
        %v658 = vmul.f32 %v651, %v323
        %v659 = vmul.f32 %v647, %v327
        %v660 = vmul.f32 %v652, %v325
        %v661 = vmul.f32 %v651, %v345
        %v662 = vmul.f32 %v647, %v349
        %v663 = vmul.f32 %v652, %v347
        %v664 = vmul.f32 %v651, %v367
        %v665 = vmul.f32 %v647, %v371
        %v666 = vmul.f32 %v652, %v369
        %v667 = vmul.f32 %v651, %v389
        %v668 = vmul.f32 %v647, %v393
        %v669 = vmul.f32 %v652, %v391
        %v670 = vmul.f32 %v651, %v411
        %v671 = vmul.f32 %v647, %v415
        %v672 = vmul.f32 %v652, %v413
        %v673 = vmul.f32 %v651, %v433
        %v674 = vmul.f32 %v647, %v437
        %v675 = vmul.f32 %v652, %v435
        %v679 = vrot.slane %v655, 4
        %v680 = vrot.slane %v656, 4
        %v681 = vrot.slane %v657, 4
        %682 = vrot.lane.b32.xlu0 %v679, 127
        %v683 = vpop.permute.xlu0 %682
        %684 = vrot.lane.b32.xlu0 %v680, 127
        %v685 = vpop.permute.xlu0 %684
        %686 = vrot.lane.b32.xlu0 %v681, 127
        %v687 = vpop.permute.xlu0 %686
        %v688 = vsel %vm456, %v683, %v685
        %v689 = vsel %vm456, %v685, %v687
        %695 = vrot.lane.b32.xlu0 %v658, 126
        %v696 = vpop.permute.xlu0 %695
        %697 = vrot.lane.b32.xlu0 %v659, 126
        %v698 = vpop.permute.xlu0 %697
        %699 = vrot.lane.b32.xlu0 %v660, 126
        %v700 = vpop.permute.xlu0 %699
        %v701 = vsel %vm470, %v696, %v698
        %v702 = vsel %vm470, %v698, %v700
        %v708 = vrot.slane %v661, 4
        %v709 = vrot.slane %v662, 4
        %v710 = vrot.slane %v663, 4
        %711 = vrot.lane.b32.xlu0 %v708, 112
        %v712 = vpop.permute.xlu0 %711
        %713 = vrot.lane.b32.xlu0 %v709, 112
        %v714 = vpop.permute.xlu0 %713
        %715 = vrot.lane.b32.xlu0 %v710, 112
        %v716 = vpop.permute.xlu0 %715
        %v717 = vsel %vm487, %v712, %v714
        %v718 = vsel %vm487, %v714, %v716
        %723 = vrot.lane.b32.xlu0 %v651, 111
        %v724 = vpop.permute.xlu0 %723
        %725 = vrot.lane.b32.xlu0 %v647, 111
        %v726 = vpop.permute.xlu0 %725
        %727 = vrot.lane.b32.xlu0 %v652, 111
        %v728 = vpop.permute.xlu0 %727
        %v729 = vsel %vm500, %v724, %v726
        %v730 = vsel %vm500, %v726, %v728
        %v736 = vrot.slane %v664, 4
        %v737 = vrot.slane %v665, 4
        %v738 = vrot.slane %v666, 4
        %739 = vrot.lane.b32.xlu0 %v736, 110
        %v740 = vpop.permute.xlu0 %739
        %741 = vrot.lane.b32.xlu0 %v737, 110
        %v742 = vpop.permute.xlu0 %741
        %743 = vrot.lane.b32.xlu0 %v738, 110
        %v744 = vpop.permute.xlu0 %743
        %v745 = vsel %vm517, %v740, %v742
        %v746 = vsel %vm517, %v742, %v744
        %752 = vrot.lane.b32.xlu0 %v667, 96
        %v753 = vpop.permute.xlu0 %752
        %754 = vrot.lane.b32.xlu0 %v668, 96
        %v755 = vpop.permute.xlu0 %754
        %756 = vrot.lane.b32.xlu0 %v669, 96
        %v757 = vpop.permute.xlu0 %756
        %v758 = vsel %vm531, %v753, %v755
        %v759 = vsel %vm531, %v755, %v757
        %v765 = vrot.slane %v670, 4
        %v766 = vrot.slane %v671, 4
        %v767 = vrot.slane %v672, 4
        %768 = vrot.lane.b32.xlu0 %v765, 95
        %v769 = vpop.permute.xlu0 %768
        %770 = vrot.lane.b32.xlu0 %v766, 95
        %v771 = vpop.permute.xlu0 %770
        %772 = vrot.lane.b32.xlu0 %v767, 95
        %v773 = vpop.permute.xlu0 %772
        %v774 = vsel %vm548, %v769, %v771
        %v775 = vsel %vm548, %v771, %v773
        %781 = vrot.lane.b32.xlu0 %v673, 94
        %v782 = vpop.permute.xlu0 %781
        %783 = vrot.lane.b32.xlu0 %v674, 94
        %v784 = vpop.permute.xlu0 %783
        %785 = vrot.lane.b32.xlu0 %v675, 94
        %v786 = vpop.permute.xlu0 %785
        %v787 = vsel %vm562, %v782, %v784
        %v788 = vsel %vm562, %v784, %v786
        %v791 = vsel %vm567, %v653, %v688
        %v792 = vsel %vm567, %v654, %v689
        %v793 = vsel %vm567, %v701, %v717
        %v794 = vsel %vm567, %v702, %v718
        %v795 = vsel %vm567, %v729, %v745
        %v796 = vsel %vm567, %v730, %v746
        %v797 = vsel %vm567, %v758, %v774
        %v798 = vsel %vm567, %v759, %v775
        %v799 = vpack.c.bf16 %v793, %v791
        %v800 = vpack.c.bf16 %v794, %v792
        %v801 = vpack.c.bf16 %v797, %v795
        %v802 = vpack.c.bf16 %v798, %v796
        %v803 = vpack.c.bf16 %v787, %v787
        %v804 = vpack.c.bf16 %v788, %v788
        %806 = vset.pattern.permute.xlu0 0
        %807 = vperm.xlu0 %806, %v261
        %v808 = vpop.permute.xlu0 %807
        %v811 = vsel %vm587, %v258, 0
        %v814 = vsel %vm591, %v803, 0
        %v817 = vsel %vm591, %v804, 0
        %819 = vmatprep.subr.bf16.mxu0 %v800
        %820 = vmatpush1.bf16.msra.mxu0 %v799
        %821 = vmatprep.subr.bf16.mxu0 %v802
        %822 = vmatpush1.bf16.msra.mxu0 %v801
        %823 = vmatprep.subr.bf16.mxu0 %v817
        %824 = vmatpush1.bf16.msra.mxu0 %v814
        %825 = vmatprep.subr.bf16.mxu0 0
        %826 = vmatpush1.bf16.msra.mxu0 0
        %827 = vmatprep.subr.bf16.mxu0 0
        %828 = vmatpush1.bf16.msra.mxu0 0
        %829 = vmatprep.subr.bf16.mxu0 0
        %830 = vmatpush1.bf16.msra.mxu0 0
        %831 = vmatprep.subr.bf16.mxu0 0
        %832 = vmatpush1.bf16.msra.mxu0 0
        %833 = vmatprep.subr.bf16.mxu0 0
        %834 = vmatpush1.bf16.msra.mxu0 0
        %835 = vmatprep.subr.bf16.mxu0 0
        %836 = vmatpush1.bf16.msra.mxu0 0
        %837 = vmatprep.subr.bf16.mxu0 0
        %838 = vmatpush1.bf16.msra.mxu0 0
        %839 = vmatprep.subr.bf16.mxu0 0
        %840 = vmatpush1.bf16.msra.mxu0 0
        %841 = vmatprep.subr.bf16.mxu0 0
        %842 = vmatpush1.bf16.msra.mxu0 0
        %843 = vmatprep.subr.bf16.mxu0 0
        %844 = vmatpush1.bf16.msra.mxu0 0
        %845 = vmatprep.subr.bf16.mxu0 0
        %846 = vmatpush1.bf16.msra.mxu0 0
        %847 = vmatprep.subr.bf16.mxu0 0
        %848 = vmatpush1.bf16.msra.mxu0 0
        %849 = vmatprep.subr.bf16.mxu0 0
        %850 = vmatpush1.bf16.msra.mxu0 0
        %851 = vmatprep.mubr.bf16.mxu0 0
        %852 = vmatmul.mubr.bf16.gmra.mrb[0].mxu0 %v811
        %v853 = vpop.f32.mrb[0].mxu0
        %v854 = vadd.f32 %v808, %v853
        %v855 = vpop.f32.mrb[0].mxu0
        %v856 = vadd.f32 %v808, %v855
        %v857 = vpop.f32.mrb[0].mxu0
        %v858 = vpop.f32.mrb[0].mxu0
        %859 = vdwg.mxu0
        %v861 = vadd.f32 %v854, %v266
        %v862 = vadd.f32 %v856, %v268
        %v863 = vmax.f32 %v861, 0.0
        %v864 = vmax.f32 %v862, 0.0
        %v867 = vcombine.low %v863, %v864
        %869 = vst [vmem:[%s255] sm:$0xff] %v867
        %s870 = sand.u32 %s141, 1
        %s871 = scalar_lea.sflag [#allocation4], %s870
        %s872 = sand.u32 %s141, 1
        %s873 = smul.addr %s872, 8
        %s874 = scalar_lea.vmem [#allocation7], %s873
        // Predicated region
        $region49: #{tpu_custom_call.1} parent=39 // pred_check
          %p875 = pneg %p151
        $region50: #{tpu_custom_call.1} parent=39 // pred_check_branch
          %877 = sbr.rel (%p875) target = $region52
        $region51: #{tpu_custom_call.1} parent=39 // pred_region
          %s879 = ssub.s32 128, 128
          %880 = vsyncadd %s871, %s879
          %s881 = smul.addr %s23, 2
          %s882 = smul.addr %s881, 64
          %s883 = scalar_lea.hbm %s5, %s882
          %s885 = sshll.u32 %s874, 4
          %s886 = int_to_ptr.vmem [resolvable:$true] %s885
          %888 = dma.vmem_to_hbm [thread:$0]  %s886, 128, %s883, %s871
        $region52: #{tpu_custom_call.1} parent=39 // pred_fallthru
          _
      $region40: #{tpu_custom_call.1} parent=5 // pred_fallthru
        _
      %p889 = scmp.le.s32.totalorder 2, %s18
      // Predicated region
      $region53: #{tpu_custom_call.1} parent=5 // pred_check
        %p890 = pneg %p889
      $region54: #{tpu_custom_call.1} parent=5 // pred_check_branch
        %892 = sbr.rel (%p890) target = $region56
      $region55: #{tpu_custom_call.1} parent=5 // pred_region
        %s893 = ssub.s32 %s18, 2
        // Predicated region
        $region57: #{tpu_custom_call.1} parent=55 // pred_check
          %p894 = pneg %p157
        $region58: #{tpu_custom_call.1} parent=55 // pred_check_branch
          %896 = sbr.rel (%p894) target = $region60
        $region59: #{tpu_custom_call.1} parent=55 // pred_region
          %s897 = sand.u32 %s142, 1
          %s898 = scalar_lea.sflag [#allocation4], %s897
          %s899 = sand.u32 %s142, 1
          %s900 = smul.addr %s899, 8
          %s901 = scalar_lea.vmem [#allocation7], %s900
          %902 = dma.done %s898, 128
        $region60: #{tpu_custom_call.1} parent=55 // pred_fallthru
          _
      $region56: #{tpu_custom_call.1} parent=5 // pred_fallthru
        _
    $region6: #{tpu_custom_call.1} parent=1 // loop_footer
      %s22 = sadd.s32 1, %s18
    $region7: #{tpu_custom_call.1} parent=1 // loop_footer_branch
      %17 = sbr.rel target = $region3
    $region8: #{tpu_custom_call.1} parent=1 // loop_exit
      _
    %903 = vsyncpa [#allocation3], 1
    %s904 = scalar_lea.sflag [#allocation3], 1
    %905 = vsyncpa %s904, 1
    %906 = vsyncpa [#allocation6], 1
    %907 = vsyncpa [#allocation4], 1
    %s908 = scalar_lea.sflag [#allocation4], 1
    %909 = vsyncpa %s908, 1

</llo_original>
